<compile_context>
chip_gen: v5e
topology: v5e:2x2
jax: 0.10.0
libtpu: 0.0.40
codegen_flags: <defaults>
</compile_context>

<pallas_src>
import jax
import jax.numpy as jnp
from jax.experimental import pallas as pl
from jax.experimental.pallas import tpu as pltpu


def _nmt_tail_kernel(emb_ref, fw_ref, bw_ref, wt_ref, out_ref):
    """Tail of NMTModel.forward for one (block_b, T) slab.

    emb_ref, fw_ref, bw_ref : (Bb, T, H)   decoder embedding / fw / bw outputs
    wt_ref                  : (2H, 2H)     dense weight transposed (x @ wt == x @ W.T)
    out_ref                 : (Bb, T, 4H)  [shift_concat(fw,bw) | dense(shift_concat(emb,emb))]
    """
    bb, t, h = emb_ref.shape
    m = bb * t
    f32 = jnp.float32

    emb = emb_ref[...].astype(f32)   # (Bb, T, H)
    fw = fw_ref[...].astype(f32)     # (Bb, T, H)
    bw = bw_ref[...].astype(f32)     # (Bb, T, H)
    wt = wt_ref[...].astype(f32)     # (2H, 2H)

    def shift_right(x):
        # torch.cat([zeros, x[:, :-1]], 1) along the time axis.
        z = jnp.zeros_like(x[:, :1])
        return jnp.concatenate([z, x[:, :-1]], axis=1)

    def shift_left(x):
        # torch.cat([x[:, 1:], zeros], 1) along the time axis.
        z = jnp.zeros_like(x[:, :1])
        return jnp.concatenate([x[:, 1:], z], axis=1)

    # shift_concat(dec_out_fw, dec_out_bw) pieces.
    dec_fw_s = shift_right(fw)   # (Bb, T, H)
    dec_bw_s = shift_left(bw)    # (Bb, T, H)

    # dense(shift_concat(emb, emb)): the time shift is a row operation, so it
    # commutes with the matmul; splitting the weight avoids materializing the
    # (Bb, T, 2H) lane concat of the shifted inputs.  The matmuls run on a
    # single (Bb*T, H) slab so the whole batch block feeds the MXU M dimension.
    emb2 = emb.reshape(m, h)     # T == sublane multiple -> layout-trivial reshape
    p_top = jnp.dot(emb2, wt[:h, :], preferred_element_type=f32)   # (M, 2H)
    p_bot = jnp.dot(emb2, wt[h:, :], preferred_element_type=f32)   # (M, 2H)
    proj = (shift_right(p_top.reshape(bb, t, 2 * h))
            + shift_left(p_bot.reshape(bb, t, 2 * h)))             # (Bb, T, 2H)

    if h % 128 == 0:
        # Lane-aligned slice stores (unmasked vst) when H is a lane multiple.
        out_ref[:, :, 0:h] = dec_fw_s.astype(out_ref.dtype)
        out_ref[:, :, h:2 * h] = dec_bw_s.astype(out_ref.dtype)
        out_ref[:, :, 2 * h:] = proj.astype(out_ref.dtype)
    else:
        # For small H (e.g. 32 -> 4H = 128) a single full-width store is better
        # than sub-128-lane masked partial stores.
        out_ref[...] = jnp.concatenate(
            [dec_fw_s, dec_bw_s, proj], axis=-1).astype(out_ref.dtype)


def _pick_block_b(batch, t, target_rows=512):
    """Largest divisor of `batch` with block_b*T <= target_rows (fills the MXU M
    dimension), preferring >=2 grid blocks when M stays large (v7x megacore)."""
    best = 1
    for bb in range(1, batch + 1):
        if batch % bb == 0 and bb * t <= target_rows:
            best = bb
    if best == batch and batch % 2 == 0 and (batch // 2) * t >= 256:
        best = batch // 2
    return best


def nmt_tail_pallas(emb_bt, fw_bt, bw_bt, dense_w, *, block_b=None):
    """emb/fw/bw are batch-major [B, T, H]; dense_w is torch-style [2H, 2H] (out, in).
    Returns [B, T, 4H]."""
    B, T, H = emb_bt.shape
    if block_b is None:
        block_b = _pick_block_b(B, T)
    assert B % block_b == 0
    grid_b = B // block_b

    wt = dense_w.T  # so x @ wt == x @ W.T (torch nn.Linear, bias=False)

    in_bytes = emb_bt.dtype.itemsize
    cost = pl.CostEstimate(
        flops=2 * B * T * (2 * H) * (2 * H),
        transcendentals=0,
        bytes_accessed=(3 * B * T * H) * in_bytes
        + (B * T * 4 * H) * 4
        + (2 * H) * (2 * H) * 4,
    )

    # VMEM budget from the actual block sizes (double-buffered I/O plus
    # headroom for in-kernel f32 intermediates); stays well under v7x's 64 MiB.
    block_bytes = (2 * (3 * block_b * T * H * in_bytes + block_b * T * 4 * H * 4)
                   + 2 * (2 * H) * (2 * H) * 4)
    vmem_limit = int(min(max(4 * block_bytes, 8 << 20), 48 << 20))

    return pl.pallas_call(
        _nmt_tail_kernel,
        out_shape=jax.ShapeDtypeStruct((B, T, 4 * H), jnp.float32),
        grid_spec=pltpu.PrefetchScalarGridSpec(
            num_scalar_prefetch=0,
            grid=(grid_b,),
            in_specs=[
                pl.BlockSpec((block_b, T, H), lambda b: (b, 0, 0)),
                pl.BlockSpec((block_b, T, H), lambda b: (b, 0, 0)),
                pl.BlockSpec((block_b, T, H), lambda b: (b, 0, 0)),
                pl.BlockSpec((2 * H, 2 * H), lambda b: (0, 0)),
            ],
            out_specs=pl.BlockSpec((block_b, T, 4 * H), lambda b: (b, 0, 0)),
        ),
        compiler_params=pltpu.CompilerParams(
            dimension_semantics=("parallel",),
            vmem_limit_bytes=vmem_limit,
        ),
        cost_estimate=cost,
    )(emb_bt, fw_bt, bw_bt, wt)


# ----------------------------------------------------------------------------
# Parameters + stub encoder/decoder (deterministic, in-script).
# TODO(synk): the real encoder/decoder are external onmt RNN/Transformer
# modules injected into NMTModel; they are approximated by an embedding +
# projection stack here (NMTModel's own math — the Pallas tail — is exact).
# ----------------------------------------------------------------------------
def init_params(key, vocab=50, hidden=32):
    ks = jax.random.split(key, 6)
    s = 0.1
    return {
        "src_embed": s * jax.random.normal(ks[0], (vocab, hidden), jnp.float32),
        "tgt_embed": s * jax.random.normal(ks[1], (vocab, hidden), jnp.float32),
        "w_enc": s * jax.random.normal(ks[2], (hidden, hidden), jnp.float32),
        "w_dec_fw": s * jax.random.normal(ks[3], (hidden, hidden), jnp.float32),
        "w_dec_bw": s * jax.random.normal(ks[4], (hidden, hidden), jnp.float32),
        # nn.Linear(2H, 2H, bias=False): weight is [out_features, in_features]
        "dense_w": s * jax.random.normal(ks[5], (2 * hidden, 2 * hidden), jnp.float32),
    }


def _stub_encoder_decoder(params, src, tgt):
    """Stub encoder/decoder; emits batch-major [B, T, H] decoder tensors so no
    XLA transposes are needed in front of the Pallas tail."""
    emb_src = params["src_embed"][src]                         # [S, B, H]
    memory_bank = jnp.tanh(emb_src @ params["w_enc"])          # [S, B, H]
    ctx = jnp.mean(memory_bank, axis=0)                        # [B, H]

    emb_fw = params["tgt_embed"][tgt.T]                        # [B, T, H]
    dec_out_fw = jnp.tanh(emb_fw @ params["w_dec_fw"] + ctx[:, None, :])
    dec_out_bw = jnp.tanh(emb_fw @ params["w_dec_bw"] + ctx[:, None, :])
    return emb_fw, dec_out_fw, dec_out_bw


@jax.jit
def nmt_forward(params, src, tgt, lengths):
    """src: [S, B] int32, tgt: [T, B] int32, lengths: [B] int32.
    Returns bi_outputs: [T, B, 4H] float32 (same layout as the PyTorch module)."""
    del lengths  # the stub encoder does not mask; kept for signature parity
    emb_fw, dec_out_fw, dec_out_bw = _stub_encoder_decoder(params, src, tgt)
    bi_bt = nmt_tail_pallas(emb_fw, dec_out_fw, dec_out_bw, params["dense_w"])
    return jnp.transpose(bi_bt, (1, 0, 2))                     # [T, B, 4H]


def _tail_reference(emb_bt, fw_bt, bw_bt, dense_w):
    """Pure-JAX reference of the NMTModel tail (mirrors the PyTorch formula)."""
    def shift_concat(fw, bw):
        zf = jnp.zeros_like(fw[:, 0:1])
        zb = jnp.zeros_like(bw[:, 0:1])
        fw_s = jnp.concatenate([zf, fw[:, :-1]], axis=1)
        bw_s = jnp.concatenate([bw[:, 1:], zb], axis=1)
        return jnp.concatenate([fw_s, bw_s], axis=-1)

    shift_outputs = shift_concat(fw_bt, bw_bt)
    shift_inputs = shift_concat(emb_bt, emb_bt)
    shift_proj = shift_inputs @ dense_w.T
    return jnp.concatenate([shift_outputs, shift_proj], axis=-1)   # [B, T, 4H]


if __name__ == "__main__":
    key = jax.random.PRNGKey(0)
    k_par, k_src, k_tgt = jax.random.split(key, 3)

    B, S, T, H, V = 2, 10, 8, 32, 50   # batch, src len, tgt len, dec_rnn_size, vocab
    params = init_params(k_par, vocab=V, hidden=H)

    src = jax.random.randint(k_src, (S, B), 0, V, dtype=jnp.int32)
    tgt = jax.random.randint(k_tgt, (T, B), 0, V, dtype=jnp.int32)
    lengths = jnp.full((B,), S, dtype=jnp.int32)

    out = nmt_forward(params, src, tgt, lengths)
    out = jax.block_until_ready(out)
    assert out.shape == (T, B, 4 * H), out.shape

    # Self-check the Pallas tail against a pure-JAX reference.
    emb_fw, dec_fw, dec_bw = _stub_encoder_decoder(params, src, tgt)
    ref = jnp.transpose(
        _tail_reference(emb_fw, dec_fw, dec_bw, params["dense_w"]), (1, 0, 2))
    assert jnp.allclose(out, ref, atol=1e-5, rtol=1e-5)

    print("KERNEL_OK")
</pallas_src>

<mosaic_0001>
module attributes {stable_mosaic.version = 11 : i64} {
  func.func @_nmt_tail_kernel(%arg0: i32, %arg1: memref<2x8x32xf32, #tpu.memory_space<vmem>>, %arg2: memref<2x8x32xf32, #tpu.memory_space<vmem>>, %arg3: memref<2x8x32xf32, #tpu.memory_space<vmem>>, %arg4: memref<64x64xf32, #tpu.memory_space<vmem>>, %arg5: memref<2x8x128xf32, #tpu.memory_space<vmem>>) attributes {dimension_semantics = [#tpu.dimension_semantics<parallel>], iteration_bounds = array<i64: 1>, scalar_prefetch = 0 : i64, scratch_operands = 0 : i64, tpu.core_type = #tpu.core_type<tc>, window_params = [{transform_indices = @transform_0, window_bounds = array<i64: 2, 8, 32>}, {transform_indices = @transform_1, window_bounds = array<i64: 2, 8, 32>}, {transform_indices = @transform_2, window_bounds = array<i64: 2, 8, 32>}, {pipeline_mode = #tpu.pipeline_mode<synchronous>, transform_indices = @transform_3, window_bounds = array<i64: 64, 64>}, {transform_indices = @transform_4, window_bounds = array<i64: 2, 8, 128>}]} {
    %c0 = arith.constant 0 : index
    %c0_0 = arith.constant 0 : index
    %c0_1 = arith.constant 0 : index
    %0 = vector.load %arg1[%c0, %c0_0, %c0_1] : memref<2x8x32xf32, #tpu.memory_space<vmem>>, vector<2x8x32xf32>
    %c0_2 = arith.constant 0 : index
    %c0_3 = arith.constant 0 : index
    %c0_4 = arith.constant 0 : index
    %1 = vector.load %arg2[%c0_2, %c0_3, %c0_4] : memref<2x8x32xf32, #tpu.memory_space<vmem>>, vector<2x8x32xf32>
    %c0_5 = arith.constant 0 : index
    %c0_6 = arith.constant 0 : index
    %c0_7 = arith.constant 0 : index
    %2 = vector.load %arg3[%c0_5, %c0_6, %c0_7] : memref<2x8x32xf32, #tpu.memory_space<vmem>>, vector<2x8x32xf32>
    %c0_8 = arith.constant 0 : index
    %c0_9 = arith.constant 0 : index
    %3 = vector.load %arg4[%c0_8, %c0_9] : memref<64x64xf32, #tpu.memory_space<vmem>>, vector<64x64xf32>
    %cst = arith.constant 0.000000e+00 : f32
    %4 = vector.broadcast %cst : f32 to vector<2x1x32xf32>
    %5 = vector.extract_strided_slice %1 {offsets = [0, 0, 0], sizes = [2, 7, 32], strides = [1, 1, 1]} : vector<2x8x32xf32> to vector<2x7x32xf32>
    %6 = tpu.concatenate %4, %5 in 1 : vector<2x1x32xf32>, vector<2x7x32xf32> -> vector<2x8x32xf32>
    %cst_10 = arith.constant 0.000000e+00 : f32
    %7 = vector.broadcast %cst_10 : f32 to vector<2x1x32xf32>
    %8 = vector.extract_strided_slice %2 {offsets = [0, 1, 0], sizes = [2, 7, 32], strides = [1, 1, 1]} : vector<2x8x32xf32> to vector<2x7x32xf32>
    %9 = tpu.concatenate %8, %7 in 1 : vector<2x7x32xf32>, vector<2x1x32xf32> -> vector<2x8x32xf32>
    %10 = vector.shape_cast %0 : vector<2x8x32xf32> to vector<16x32xf32>
    %11 = vector.extract_strided_slice %3 {offsets = [0, 0], sizes = [32, 64], strides = [1, 1]} : vector<64x64xf32> to vector<32x64xf32>
    %cst_11 = arith.constant dense<0.000000e+00> : vector<16x64xf32>
    %12 = tpu.matmul %10, %11, %cst_11 {dimension_numbers = #tpu.dot_dimension_numbers<[1], [0], [0], [1], [0, 0, 1, 1], [], []>} : vector<16x32xf32>, vector<32x64xf32>, vector<16x64xf32> -> vector<16x64xf32>
    %13 = vector.extract_strided_slice %3 {offsets = [32, 0], sizes = [32, 64], strides = [1, 1]} : vector<64x64xf32> to vector<32x64xf32>
    %cst_12 = arith.constant dense<0.000000e+00> : vector<16x64xf32>
    %14 = tpu.matmul %10, %13, %cst_12 {dimension_numbers = #tpu.dot_dimension_numbers<[1], [0], [0], [1], [0, 0, 1, 1], [], []>} : vector<16x32xf32>, vector<32x64xf32>, vector<16x64xf32> -> vector<16x64xf32>
    %15 = vector.shape_cast %12 : vector<16x64xf32> to vector<2x8x64xf32>
    %cst_13 = arith.constant 0.000000e+00 : f32
    %16 = vector.broadcast %cst_13 : f32 to vector<2x1x64xf32>
    %17 = vector.extract_strided_slice %15 {offsets = [0, 0, 0], sizes = [2, 7, 64], strides = [1, 1, 1]} : vector<2x8x64xf32> to vector<2x7x64xf32>
    %18 = tpu.concatenate %16, %17 in 1 : vector<2x1x64xf32>, vector<2x7x64xf32> -> vector<2x8x64xf32>
    %19 = vector.shape_cast %14 : vector<16x64xf32> to vector<2x8x64xf32>
    %cst_14 = arith.constant 0.000000e+00 : f32
    %20 = vector.broadcast %cst_14 : f32 to vector<2x1x64xf32>
    %21 = vector.extract_strided_slice %19 {offsets = [0, 1, 0], sizes = [2, 7, 64], strides = [1, 1, 1]} : vector<2x8x64xf32> to vector<2x7x64xf32>
    %22 = tpu.concatenate %21, %20 in 1 : vector<2x7x64xf32>, vector<2x1x64xf32> -> vector<2x8x64xf32>
    %23 = arith.addf %18, %22 : vector<2x8x64xf32>
    %24 = tpu.concatenate %6, %9, %23 in 2 : vector<2x8x32xf32>, vector<2x8x32xf32>, vector<2x8x64xf32> -> vector<2x8x128xf32>
    %c0_15 = arith.constant 0 : index
    %c0_16 = arith.constant 0 : index
    %c0_17 = arith.constant 0 : index
    %25 = vector.load %arg5[%c0_15, %c0_16, %c0_17] : memref<2x8x128xf32, #tpu.memory_space<vmem>>, vector<2x8x128xf32>
    tpu.vector_store %arg5[%c0_15, %c0_16, %c0_17], %24 {strides = array<i32>} : memref<2x8x128xf32, #tpu.memory_space<vmem>>, vector<2x8x128xf32>,
    return
  }
  func.func @transform_0(%arg0: i32) -> (i32, i32, i32) {
    %c0_i32 = arith.constant 0 : i32
    %c0_i32_0 = arith.constant 0 : i32
    %c0_i32_1 = arith.constant 0 : i32
    return %arg0, %c0_i32, %c0_i32_0 : i32, i32, i32
  }
  func.func @transform_1(%arg0: i32) -> (i32, i32, i32) {
    %c0_i32 = arith.constant 0 : i32
    %c0_i32_0 = arith.constant 0 : i32
    %c0_i32_1 = arith.constant 0 : i32
    return %arg0, %c0_i32, %c0_i32_0 : i32, i32, i32
  }
  func.func @transform_2(%arg0: i32) -> (i32, i32, i32) {
    %c0_i32 = arith.constant 0 : i32
    %c0_i32_0 = arith.constant 0 : i32
    %c0_i32_1 = arith.constant 0 : i32
    return %arg0, %c0_i32, %c0_i32_0 : i32, i32, i32
  }
  func.func @transform_3(%arg0: i32) -> (i32, i32) {
    %c0_i32 = arith.constant 0 : i32
    %c0_i32_0 = arith.constant 0 : i32
    %c0_i32_1 = arith.constant 0 : i32
    return %c0_i32, %c0_i32_0 : i32, i32
  }
  func.func @transform_4(%arg0: i32) -> (i32, i32, i32) {
    %c0_i32 = arith.constant 0 : i32
    %c0_i32_0 = arith.constant 0 : i32
    %c0_i32_1 = arith.constant 0 : i32
    return %arg0, %c0_i32, %c0_i32_0 : i32, i32, i32
  }
}

</mosaic_0001>

<llo_original>
// kernel: nmt_forward.1
$region0: #{nmt_forward.1}
  #allocation0 [shape = 'u32[]', space=smem, size = 0x4, offset = 0x4, fixed_abs, tag = 'smem constant byte address 0x4 - core index']
  #allocation1 [shape = 'u32[72,128]{1,0:T(1,128)}', space=vmem, size = 0x9000, scoped, tag = 'internal scratch']
  %s0 = inlined_call_operand.vmem [shape: f32[2,8,32], index: 0, kind: input, shape index: {}]
  %s1 = inlined_call_operand.vmem [shape: f32[2,8,32], index: 1, kind: input, shape index: {}]
  %s2 = inlined_call_operand.vmem [shape: f32[2,8,32], index: 2, kind: input, shape index: {}]
  %s3 = inlined_call_operand.vmem [shape: f32[64,64], index: 3, kind: input, shape index: {}]
  %s4 = inlined_call_operand.vmem [shape: f32[2,8,128], index: 4, kind: output, shape index: {}]
  %s5 = sld [smem:[#allocation0]]
  $region26: #{nmt_forward.1} parent=0
    _
  %s7 = ssub.s32 1, %s5
  %s8 = scalar_select 0, %s7, %s5
  // Predicated region
  $region2: #{nmt_forward.1} parent=0 // pred_check
    _
  $region3: #{nmt_forward.1} parent=0 // pred_check_branch
    %10 = sbr.rel (0) target = $region5
  $region4: #{nmt_forward.1} parent=0 // pred_region
    _
  $region5: #{nmt_forward.1} parent=0 // pred_fallthru
    _
  // Predicated region
  $region6: #{nmt_forward.1} parent=0 // pred_check
    _
  $region7: #{nmt_forward.1} parent=0 // pred_check_branch
    %12 = sbr.rel (0) target = $region9
  $region8: #{nmt_forward.1} parent=0 // pred_region
    _
  $region9: #{nmt_forward.1} parent=0 // pred_fallthru
    _
  // Predicated region
  $region10: #{nmt_forward.1} parent=0 // pred_check
    _
  $region11: #{nmt_forward.1} parent=0 // pred_check_branch
    %14 = sbr.rel (0) target = $region13
  $region12: #{nmt_forward.1} parent=0 // pred_region
    _
  $region13: #{nmt_forward.1} parent=0 // pred_fallthru
    _
  // Predicated region
  $region14: #{nmt_forward.1} parent=0 // pred_check
    _
  $region15: #{nmt_forward.1} parent=0 // pred_check_branch
    %16 = sbr.rel (0) target = $region17
  $region16: #{nmt_forward.1} parent=0 // pred_region
    _
  $region17: #{nmt_forward.1} parent=0 // pred_fallthru
    _
  %v17 = vld [vmem:[%s0] sm:$0xff]
  %v18 = vld [vmem:[%s0 + $0x8] sm:$0xff]
  %v19 = vld [vmem:[%s1] sm:$0xff]
  %v20 = vld [vmem:[%s1 + $0x8] sm:$0xff]
  %v21 = vld [vmem:[%s2] sm:$0xff]
  %v22 = vld [vmem:[%s2 + $0x8] sm:$0xff]
  %v23 = vld [vmem:[%s3] sm:$0xff]
  %v24 = vld [vmem:[%s3 + $0x8] sm:$0xff]
  %v25 = vld [vmem:[%s3 + $0x10] sm:$0xff]
  %v26 = vld [vmem:[%s3 + $0x18] sm:$0xff]
  %v27 = vld [vmem:[%s3 + $0x20] sm:$0xff]
  %v28 = vld [vmem:[%s3 + $0x28] sm:$0xff]
  %v29 = vld [vmem:[%s3 + $0x30] sm:$0xff]
  %v30 = vld [vmem:[%s3 + $0x38] sm:$0xff]
  %v33 = vrot.slane %v19, 7
  %v34 = vrot.slane %v20, 7
  %vm37 = vcmask 1040384
  %v38 = vsel %vm37, 0.0, %v33
  %v39 = vsel %vm37, 0.0, %v34
  %v42 = vrot.slane %v21, 1
  %v43 = vrot.slane %v22, 1
  %vm46 = vcmask 1046528
  %v47 = vsel %vm46, %v42, 0.0
  %v48 = vsel %vm46, %v43, 0.0
  %vm49 = vcmask 261120
  %v51 = vsel %vm49, %v17, 0
  %v54 = vsel %vm49, %v18, 0
  %56 = vmatpush.msra.mxu0 0.0
  %57 = vmatpush.msra.mxu0 0.0
  %58 = vmatpush.msra.mxu0 0.0
  %59 = vmatpush.msra.mxu0 0.0
  %60 = vmatpush.msra.mxu0 0.0
  %61 = vmatpush.msra.mxu0 0.0
  %62 = vmatpush.msra.mxu0 0.0
  %63 = vmatpush.msra.mxu0 0.0
  %64 = vmatpush.msra.mxu0 0.0
  %65 = vmatpush.msra.mxu0 0.0
  %66 = vmatpush.msra.mxu0 0.0
  %67 = vmatpush.msra.mxu0 0.0
  %68 = vmatpush.msra.mxu0 %v26
  %69 = vmatpush.msra.mxu0 %v25
  %70 = vmatpush.msra.mxu0 %v24
  %71 = vmatpush.msra.mxu0 %v23
  %72 = vmatmul.f32.gmra.mxu0 %v51
  %v73 = vpop.f32.mrf.mxu0
  %v74 = vadd.f32 0.0, %v73
  %75 = vmatmul.f32.gmra.mxu0 %v54
  %v76 = vpop.f32.mrf.mxu0
  %v77 = vadd.f32 0.0, %v76
  %78 = vdwg.mxu0
  %79 = vmatpush.msra.mxu0 0.0
  %80 = vmatpush.msra.mxu0 0.0
  %81 = vmatpush.msra.mxu0 0.0
  %82 = vmatpush.msra.mxu0 0.0
  %83 = vmatpush.msra.mxu0 0.0
  %84 = vmatpush.msra.mxu0 0.0
  %85 = vmatpush.msra.mxu0 0.0
  %86 = vmatpush.msra.mxu0 0.0
  %87 = vmatpush.msra.mxu0 0.0
  %88 = vmatpush.msra.mxu0 0.0
  %89 = vmatpush.msra.mxu0 0.0
  %90 = vmatpush.msra.mxu0 0.0
  %91 = vmatpush.msra.mxu0 %v30
  %92 = vmatpush.msra.mxu0 %v29
  %93 = vmatpush.msra.mxu0 %v28
  %94 = vmatpush.msra.mxu0 %v27
  %95 = vmatmul.f32.gmra.mxu0 %v51
  %v96 = vpop.f32.mrf.mxu0
  %v97 = vadd.f32 0.0, %v96
  %98 = vmatmul.f32.gmra.mxu0 %v54
  %v99 = vpop.f32.mrf.mxu0
  %v100 = vadd.f32 0.0, %v99
  %101 = vdwg.mxu0
  %v104 = vrot.slane %v74, 7
  %v105 = vrot.slane %v77, 7
  %v108 = vsel %vm37, 0.0, %v104
  %v109 = vsel %vm37, 0.0, %v105
  %v112 = vrot.slane %v97, 1
  %v113 = vrot.slane %v100, 1
  %v116 = vsel %vm46, %v112, 0.0
  %v117 = vsel %vm46, %v113, 0.0
  %v118 = vadd.f32 %v108, %v116
  %v119 = vadd.f32 %v109, %v117
  %122 = vrot.lane.b32.xlu0 %v47, 32
  %v123 = vpop.permute.xlu0 %122
  %124 = vrot.lane.b32.xlu0 %v48, 32
  %v125 = vpop.permute.xlu0 %124
  %130 = vrot.lane.b32.xlu0 %v118, 64
  %v131 = vpop.permute.xlu0 %130
  %132 = vrot.lane.b32.xlu0 %v119, 64
  %v133 = vpop.permute.xlu0 %132
  %v136 = vsel %vm49, %v38, %v123
  %v137 = vsel %vm49, %v39, %v125
  %vm138 = vcmask 523264
  %v139 = vsel %vm138, %v136, %v131
  %v140 = vsel %vm138, %v137, %v133
  %141 = vst [vmem:[%s4] sm:$0xff] %v139
  %142 = vst [vmem:[%s4 + $0x8] sm:$0xff] %v140
  // Predicated region
  $region18: #{nmt_forward.1} parent=0 // pred_check
    _
  $region19: #{nmt_forward.1} parent=0 // pred_check_branch
    %144 = sbr.rel (0) target = $region21
  $region20: #{nmt_forward.1} parent=0 // pred_region
    _
  $region21: #{nmt_forward.1} parent=0 // pred_fallthru
    _
  // Predicated region
  $region22: #{nmt_forward.1} parent=0 // pred_check
    _
  $region23: #{nmt_forward.1} parent=0 // pred_check_branch
    %146 = sbr.rel (0) target = $region25
  $region24: #{nmt_forward.1} parent=0 // pred_region
    _
  $region25: #{nmt_forward.1} parent=0 // pred_fallthru
    _

</llo_original>
